<compile_context>
chip_gen: v5e
topology: v5e:2x2
jax: 0.10.0
libtpu: 0.0.40
codegen_flags: <defaults>
</compile_context>

<pallas_src>
import functools

import jax
import jax.numpy as jnp
from jax.experimental import pallas as pl
from jax.experimental.pallas import tpu as pltpu

_THRESHOLD = 1
_VALUE = 2

_LANE = 128
_SUBLANE = 8
_BLOCK_ELEMS = 1 << 20                    # ~4 MiB of int32 per block buffer
_VMEM_LIMIT_BYTES = 32 * 1024 * 1024      # safe on v5e/v6e/v7x, >> our ~16 MiB use
_PAD_WIDTH = 1024                         # width used only on the ragged (padded) path


def _threshold_kernel(x_ref, o_ref):
    # out = x where x > threshold else value  (one compare + select on the VPU)
    x = x_ref[...]
    o_ref[...] = jnp.where(x > _THRESHOLD, x, jnp.full_like(x, _VALUE))


def _choose_width(n):
    """Widest lane-dense width that divides n -> zero-copy reshape, wide stores."""
    for w in (4096, 2048, 1024, 512, 256, _LANE):
        if n % w == 0:
            return w
    return None


def _threshold_2d(x2):
    """Run the Pallas kernel over a (rows, width) int array, width % 128 == 0."""
    rows, width = x2.shape
    max_rows = max(_SUBLANE, (_BLOCK_ELEMS // width) // _SUBLANE * _SUBLANE)
    # block_rows is either a multiple of 8 or the full row extent -> (8,128) rule ok;
    # the partial last grid block (rows % block_rows != 0) is masked by Pallas.
    block_rows = rows if rows <= max_rows else max_rows
    grid = (pl.cdiv(rows, block_rows),)
    block = (block_rows, width)

    return pl.pallas_call(
        _threshold_kernel,
        out_shape=jax.ShapeDtypeStruct((rows, width), x2.dtype),
        grid_spec=pltpu.PrefetchScalarGridSpec(
            num_scalar_prefetch=0,
            grid=grid,
            in_specs=[pl.BlockSpec(block, lambda i: (i, 0))],
            out_specs=pl.BlockSpec(block, lambda i: (i, 0)),
        ),
        compiler_params=pltpu.CompilerParams(
            dimension_semantics=("parallel",),
            vmem_limit_bytes=_VMEM_LIMIT_BYTES,
        ),
        cost_estimate=pl.CostEstimate(
            flops=2 * rows * width,                              # compare + select
            transcendentals=0,
            bytes_accessed=2 * rows * width * x2.dtype.itemsize,  # read + write
        ),
    )(x2)


def _threshold_pallas(inp):
    n = inp.shape[0]
    width = _choose_width(n)
    if width is not None:
        # Zero-copy: contiguous 1-D -> (rows, width) reshape is a bitcast.
        out2 = _threshold_2d(inp.reshape(n // width, width))
        return out2.reshape(n)
    # Ragged N (N % 128 != 0): pad with 0 (<= threshold, so padded tail becomes
    # `value` and is sliced away).  This path costs one extra read/write pair;
    # ragged sizes small enough to matter take the jnp.where fast path instead.
    n_pad = ((n + _PAD_WIDTH - 1) // _PAD_WIDTH) * _PAD_WIDTH
    x = jnp.pad(inp, (0, n_pad - n))
    out2 = _threshold_2d(x.reshape(n_pad // _PAD_WIDTH, _PAD_WIDTH))
    return out2.reshape(n_pad)[:n]


@functools.partial(jax.jit, static_argnames=("force_pallas",))
def threshold_1d(inp: jax.Array, force_pallas: bool = False) -> jax.Array:
    """Pallas equivalent of torch.ops.aten.threshold(input, 1, 2) for 1-D int input."""
    assert inp.ndim == 1
    n = inp.shape[0]
    # Small-N fast path (perf review): one-block launches can't beat XLA's fused
    # elementwise loop and this avoids all pad/slice copies for ragged sizes.
    if not force_pallas and n <= _BLOCK_ELEMS:
        return jnp.where(inp > _THRESHOLD, inp, jnp.asarray(_VALUE, inp.dtype))
    return _threshold_pallas(inp)


if __name__ == "__main__":
    key = jax.random.PRNGKey(0)
    k1, k2, k3 = jax.random.split(key, 3)

    # 1) Ragged small N (the module's typical shape): forced Pallas exercises the
    #    pad+slice fallback; the dispatcher itself uses the jnp.where fast path.
    n1 = 1000
    x1 = jax.random.randint(k1, (n1,), minval=-3, maxval=5, dtype=jnp.int32)
    ref1 = jnp.where(x1 > _THRESHOLD, x1, _VALUE)
    out1 = jax.block_until_ready(threshold_1d(x1, force_pallas=True))
    assert out1.shape == x1.shape and out1.dtype == x1.dtype
    assert bool(jnp.array_equal(out1, ref1)), "mismatch (ragged Pallas path)"
    out1_fast = jax.block_until_ready(threshold_1d(x1))
    assert bool(jnp.array_equal(out1_fast, ref1)), "mismatch (small-N fast path)"

    # 2) 128-aligned N: zero-copy wide (rows, 4096) Pallas path, no pad, no slice.
    n2 = 8192
    x2 = jax.random.randint(k2, (n2,), minval=-5, maxval=9, dtype=jnp.int32)
    ref2 = jnp.where(x2 > _THRESHOLD, x2, _VALUE)
    out2 = jax.block_until_ready(threshold_1d(x2, force_pallas=True))
    assert bool(jnp.array_equal(out2, ref2)), "mismatch (aligned wide path)"

    # 3) 128-aligned but not 256-aligned: width falls back to 128, still zero-copy.
    n3 = 384
    x3 = jax.random.randint(k3, (n3,), minval=-8, maxval=8, dtype=jnp.int32)
    ref3 = jnp.where(x3 > _THRESHOLD, x3, _VALUE)
    out3 = jax.block_until_ready(threshold_1d(x3, force_pallas=True))
    assert bool(jnp.array_equal(out3, ref3)), "mismatch (narrow aligned path)"

    print("KERNEL_OK")
</pallas_src>

<mosaic_0001>
module attributes {stable_mosaic.version = 11 : i64} {
  func.func @_threshold_kernel(%arg0: i32, %arg1: memref<1x1024xi32, #tpu.memory_space<vmem>>, %arg2: memref<1x1024xi32, #tpu.memory_space<vmem>>) attributes {dimension_semantics = [#tpu.dimension_semantics<parallel>], iteration_bounds = array<i64: 1>, scalar_prefetch = 0 : i64, scratch_operands = 0 : i64, tpu.core_type = #tpu.core_type<tc>, window_params = [{transform_indices = @transform_0, window_bounds = array<i64: 1, 1024>}, {transform_indices = @transform_1, window_bounds = array<i64: 1, 1024>}]} {
    %c0 = arith.constant 0 : index
    %c0_0 = arith.constant 0 : index
    %0 = vector.load %arg1[%c0, %c0_0] : memref<1x1024xi32, #tpu.memory_space<vmem>>, vector<1x1024xi32>
    %c1_i32 = arith.constant 1 : i32
    %1 = vector.broadcast %c1_i32 : i32 to vector<1x1024xi32>
    %2 = arith.cmpi sgt, %0, %1 : vector<1x1024xi32>
    %c2_i32 = arith.constant 2 : i32
    %3 = vector.broadcast %c2_i32 : i32 to vector<1x1024xi32>
    %4 = arith.select %2, %0, %3 : vector<1x1024xi1>, vector<1x1024xi32>
    %c0_1 = arith.constant 0 : index
    %c0_2 = arith.constant 0 : index
    %5 = vector.load %arg2[%c0_1, %c0_2] : memref<1x1024xi32, #tpu.memory_space<vmem>>, vector<1x1024xi32>
    tpu.vector_store %arg2[%c0_1, %c0_2], %4 {strides = array<i32>} : memref<1x1024xi32, #tpu.memory_space<vmem>>, vector<1x1024xi32>,
    return
  }
  func.func @transform_0(%arg0: i32) -> (i32, i32) {
    %c0_i32 = arith.constant 0 : i32
    %c0_i32_0 = arith.constant 0 : i32
    return %arg0, %c0_i32 : i32, i32
  }
  func.func @transform_1(%arg0: i32) -> (i32, i32) {
    %c0_i32 = arith.constant 0 : i32
    %c0_i32_0 = arith.constant 0 : i32
    return %arg0, %c0_i32 : i32, i32
  }
}

</mosaic_0001>

<llo_original>
// kernel: threshold_1d.1
$region0: #{threshold_1d.1}
  #allocation0 [shape = 'u32[]', space=smem, size = 0x4, offset = 0x4, fixed_abs, tag = 'smem constant byte address 0x4 - core index']
  #allocation1 [shape = 'u32[72,128]{1,0:T(1,128)}', space=vmem, size = 0x9000, scoped, tag = 'internal scratch']
  %s0 = inlined_call_operand.vmem [shape: s32[1,1024], index: 0, kind: input, shape index: {}]
  %s1 = inlined_call_operand.hbm [shape: s32[1,1024], index: 1, kind: output, shape index: {}]
  %s2 = sld [smem:[#allocation0]]
  $region14: #{threshold_1d.1} parent=0
    _
  %s4 = ssub.s32 1, %s2
  %s5 = scalar_select 0, %s4, %s2
  $region1: #{threshold_1d.1} parent=0
    #allocation2 [shape = 'u8[4096]{0}', space=vmem, size = 0x1000, scoped, tag = 'output window, operand 0, single buffered']
    #allocation3 [shape = 's32[1]{0}', space=sflag, size = 0x4, scoped, tag = 'scoped memory for threshold_1d.1']
    %6 = vsyncpa [#allocation3], 0
    // Predicated region
    $region2: #{threshold_1d.1} parent=1 // pred_check
      _
    $region3: #{threshold_1d.1} parent=1 // pred_check_branch
      %8 = sbr.rel (0) target = $region5
    $region4: #{threshold_1d.1} parent=1 // pred_region
      _
    $region5: #{threshold_1d.1} parent=1 // pred_fallthru
      _
    %v9 = vld [vmem:[%s0] sm:$0xff]
    %vm10 = vcmp.gt.s32.totalorder %v9, 1
    %v11 = vsel %vm10, %v9, 2
    %12 = vst [vmem:[#allocation2] sm:$0xff] %v11
    // Predicated region
    $region6: #{threshold_1d.1} parent=1 // pred_check
      _
    $region7: #{threshold_1d.1} parent=1 // pred_check_branch
      %14 = sbr.rel (0) target = $region9
    $region8: #{threshold_1d.1} parent=1 // pred_region
      %16 = vsyncadd [#allocation3], 0
      %s18 = sshll.u32 [#allocation2], 4
      %s19 = int_to_ptr.vmem [resolvable:$true] %s18
      %s20 = sshll.u32 %s1, 4
      %s21 = int_to_ptr.hbm [resolvable:$true] %s20
      %23 = dma.vmem_to_hbm [thread:$0]  %s19, 128, %s21, [#allocation3]
    $region9: #{threshold_1d.1} parent=1 // pred_fallthru
      _
    // Predicated region
    $region10: #{threshold_1d.1} parent=1 // pred_check
      _
    $region11: #{threshold_1d.1} parent=1 // pred_check_branch
      %25 = sbr.rel (0) target = $region13
    $region12: #{threshold_1d.1} parent=1 // pred_region
      %27 = dma.done [#allocation3], 128
    $region13: #{threshold_1d.1} parent=1 // pred_fallthru
      _
    %28 = vsyncpa [#allocation3], 1

</llo_original>
